<compile_context>
chip_gen: v6e
topology: v6e:2x2x1
jax: 0.10.0
libtpu: 0.0.40
codegen_flags: <defaults>
</compile_context>

<pallas_src>
import functools

import jax
import jax.numpy as jnp
from jax import lax
from jax.experimental import pallas as pl
from jax.experimental.pallas import tpu as pltpu

_LANE = 128
_SUBLANE = 8

_TARGET_BLOCK_BYTES = 2 * 1024 * 1024   # per-input-block byte budget (input dtype)
_MAX_BLOCK_BYTES = 2 * 1024 * 1024      # above this, fall back to padding
_FAST_PATH_F32_BYTES = 2 * 1024 * 1024  # fused single-pass path threshold (f32 bytes)
_VMEM_LIMIT = 32 * 1024 * 1024          # scoped VMEM cap (safe on v5e/v6e/v7x)


def _round_up(v, m):
    return ((v + m - 1) // m) * m


def _largest_tile(dim, unit, cap):
    """Largest multiple of `unit` that divides `dim` and is <= cap; None if dim % unit."""
    if dim % unit != 0:
        return None
    cap = max(unit, min(cap, dim))
    t = cap - cap % unit
    while dim % t:
        t -= unit
    return t


# ----------------------------------------------------------------------------
# Kernels
# ----------------------------------------------------------------------------
def _fused_kernel(w0_ref, g1_ref, b1_ref, x_ref, o_ref, *, inv_count, eps):
    """Single-pass VMEM-resident path: x is (N, C, HW), params are (1, C, 1) f32.

    out = w0*x + (x-mean)*(w1*gamma*rsqrt(var+eps)) + w1*beta,  var centered (exact).
    """
    v = x_ref[...].astype(jnp.float32)                                 # (N, C, HW)
    s = jnp.sum(jnp.sum(v, axis=2, keepdims=True), axis=0, keepdims=True)   # (1, C, 1)
    mean = s * inv_count
    d = v - mean
    q = jnp.sum(jnp.sum(d * d, axis=2, keepdims=True), axis=0, keepdims=True)
    var = q * inv_count
    inv = g1_ref[...] * lax.rsqrt(var + eps)                           # w1*gamma*rsqrt
    o_ref[...] = (v * w0_ref[...] + d * inv + b1_ref[...]).astype(o_ref.dtype)


def _stats_kernel(x_ref, sum_ref, ssq_ref):
    """Per-row sum / sum-of-squares, accumulated in the resident output block
    across the (last, 'arbitrary') column-block grid axis."""
    @pl.when(pl.program_id(2) == 0)
    def _():
        sum_ref[...] = jnp.zeros_like(sum_ref)
        ssq_ref[...] = jnp.zeros_like(ssq_ref)

    v = x_ref[...].astype(jnp.float32)                    # (tr, tc)
    s = jnp.sum(v, axis=1, keepdims=True)                 # (tr, 1)
    q = jnp.sum(v * v, axis=1, keepdims=True)
    sum_ref[...] += s[None]                               # (1, tr, 1)
    ssq_ref[...] += q[None]


def _affine_kernel(x_ref, s_ref, t_ref, o_ref):
    """out = x * scale_row + shift_row, f32 compute, I/O in the native dtypes."""
    v = x_ref[...].astype(jnp.float32)
    o_ref[...] = (v * s_ref[...] + t_ref[...]).astype(o_ref.dtype)


# ----------------------------------------------------------------------------
# pallas_call wrappers
# ----------------------------------------------------------------------------
def _fused_forward(params, x, eps):
    N, C, H, W = x.shape
    hw = H * W
    gamma = params['gamma'].astype(jnp.float32).reshape(1, C, 1)
    beta = params['beta'].astype(jnp.float32).reshape(1, C, 1)
    w0 = params['w0'].reshape(()).astype(jnp.float32)
    w1 = params['w1'].reshape(()).astype(jnp.float32)
    w0c = jnp.broadcast_to(w0, (1, C, 1))
    g1 = w1 * gamma
    b1 = w1 * beta
    x3 = x.reshape(N, C, hw)
    elems = N * C * hw
    itemsize = x.dtype.itemsize

    out3 = pl.pallas_call(
        functools.partial(_fused_kernel, inv_count=1.0 / float(N * hw), eps=float(eps)),
        out_shape=jax.ShapeDtypeStruct((N, C, hw), x.dtype),
        in_specs=[pl.BlockSpec(memory_space=pltpu.MemorySpace.VMEM)] * 4,
        out_specs=pl.BlockSpec(memory_space=pltpu.MemorySpace.VMEM),
        compiler_params=pltpu.CompilerParams(vmem_limit_bytes=_VMEM_LIMIT),
        cost_estimate=pl.CostEstimate(
            flops=8 * elems, transcendentals=C,
            bytes_accessed=2 * elems * itemsize + 3 * C * 4),
    )(w0c, g1, b1, x3)
    return out3.reshape(N, C, H, W)


def _row_stats(a, tr, tc, col_split):
    rows_a, cols_a = a.shape
    nrb, ncb = rows_a // tr, cols_a // tc
    kcb = ncb // col_split
    in_bytes = rows_a * cols_a * a.dtype.itemsize

    sums, ssqs = pl.pallas_call(
        _stats_kernel,
        out_shape=(jax.ShapeDtypeStruct((col_split, rows_a, 1), jnp.float32),
                   jax.ShapeDtypeStruct((col_split, rows_a, 1), jnp.float32)),
        grid_spec=pltpu.PrefetchScalarGridSpec(
            num_scalar_prefetch=0,
            grid=(col_split, nrb, kcb),
            in_specs=[pl.BlockSpec((tr, tc), lambda p, i, k: (i, p * kcb + k))],
            out_specs=(pl.BlockSpec((1, tr, 1), lambda p, i, k: (p, i, 0)),
                       pl.BlockSpec((1, tr, 1), lambda p, i, k: (p, i, 0)))),
        compiler_params=pltpu.CompilerParams(
            dimension_semantics=("parallel", "parallel", "arbitrary"),
            vmem_limit_bytes=_VMEM_LIMIT),
        cost_estimate=pl.CostEstimate(
            flops=3 * rows_a * cols_a, transcendentals=0,
            bytes_accessed=in_bytes + 2 * col_split * rows_a * 4),
    )(a)
    return sums, ssqs


def _apply_affine(a, scale_rows, shift_rows, tr, tc, out_dtype):
    rows_a, cols_a = a.shape
    io_bytes = rows_a * cols_a * (a.dtype.itemsize + jnp.dtype(out_dtype).itemsize)

    return pl.pallas_call(
        _affine_kernel,
        out_shape=jax.ShapeDtypeStruct((rows_a, cols_a), out_dtype),
        grid_spec=pltpu.PrefetchScalarGridSpec(
            num_scalar_prefetch=0,
            grid=(rows_a // tr, cols_a // tc),
            in_specs=[pl.BlockSpec((tr, tc), lambda i, j: (i, j)),
                      pl.BlockSpec((tr, 1), lambda i, j: (i, 0)),
                      pl.BlockSpec((tr, 1), lambda i, j: (i, 0))],
            out_specs=pl.BlockSpec((tr, tc), lambda i, j: (i, j))),
        compiler_params=pltpu.CompilerParams(
            dimension_semantics=("parallel", "parallel"),
            vmem_limit_bytes=_VMEM_LIMIT),
        cost_estimate=pl.CostEstimate(
            flops=2 * rows_a * cols_a, transcendentals=0, bytes_accessed=io_bytes),
    )(a, scale_rows, shift_rows)


def _two_pass_forward(params, x, eps, target_block_bytes):
    N, C, H, W = x.shape
    rows, cols = N * C, H * W
    a = x.reshape(rows, cols)                      # input dtype, metadata-only reshape
    itemsize = a.dtype.itemsize

    # --- tile selection: byte budget, pad-free when possible -----------------
    tc = _largest_tile(cols, _LANE, max(_LANE, target_block_bytes // (_SUBLANE * itemsize)))
    if tc is None:
        tc = cols                                   # full-extent bypasses the 128 rule
    tr = _largest_tile(rows, _SUBLANE, max(_SUBLANE, target_block_bytes // (tc * itemsize)))
    if tr is None:
        tr = rows                                   # full-extent bypasses the 8 rule
    if tr * tc * itemsize > _MAX_BLOCK_BYTES:
        # Last resort: ragged dims forced a huge full-extent block -> pad & retile.
        rows_p = _round_up(rows, _SUBLANE)
        cols_p = _round_up(cols, _LANE)
        a = jnp.pad(a, ((0, rows_p - rows), (0, cols_p - cols)))
        tc = _largest_tile(cols_p, _LANE, max(_LANE, target_block_bytes // (_SUBLANE * itemsize)))
        tr = _largest_tile(rows_p, _SUBLANE, max(_SUBLANE, target_block_bytes // (tc * itemsize)))
    rows_a, cols_a = a.shape

    nrb, ncb = rows_a // tr, cols_a // tc
    # Split pass-1 reduction across a leading parallel axis when the row grid
    # collapses to 1 (lets v7x's second TensorCore take half the columns).
    col_split = 2 if (nrb == 1 and ncb >= 2 and ncb % 2 == 0) else 1

    # --- pass 1: fused per-row sum + sum-of-squares (one read of x) ----------
    sums3, ssqs3 = _row_stats(a, tr, tc, col_split)

    # --- tiny per-channel combine in plain JAX --------------------------------
    # TODO(synk): E[x^2]-E[x]^2 in f32 can lose precision for strongly offset
    # inputs; the single-pass fast path uses exact centered variance instead.
    cnt = jnp.float32(N * H * W)
    row_sum = sums3.sum(axis=0)[:rows, 0]
    row_ssq = ssqs3.sum(axis=0)[:rows, 0]
    ch_sum = row_sum.reshape(N, C).sum(axis=0)
    ch_ssq = row_ssq.reshape(N, C).sum(axis=0)
    mean = ch_sum / cnt
    var = jnp.maximum(ch_ssq / cnt - mean * mean, 0.0)     # biased variance
    gamma = params['gamma'].astype(jnp.float32)
    beta = params['beta'].astype(jnp.float32)
    w0 = params['w0'].reshape(()).astype(jnp.float32)
    w1 = params['w1'].reshape(()).astype(jnp.float32)
    inv = gamma * lax.rsqrt(var + eps)
    scale_c = w0 + w1 * inv                                # out = x*scale_c + shift_c
    shift_c = w1 * (beta - mean * inv)

    scale_rows = jnp.tile(scale_c, N)
    shift_rows = jnp.tile(shift_c, N)
    if rows_a > rows:
        scale_rows = jnp.pad(scale_rows, (0, rows_a - rows))
        shift_rows = jnp.pad(shift_rows, (0, rows_a - rows))
    scale_rows = scale_rows.reshape(rows_a, 1)
    shift_rows = shift_rows.reshape(rows_a, 1)

    # --- pass 2: fused normalize + affine + residual (one read + one write) --
    out = _apply_affine(a, scale_rows, shift_rows, tr, tc, x.dtype)
    if (rows_a, cols_a) != (rows, cols):
        out = out[:rows, :cols]
    return out.reshape(N, C, H, W)


# ----------------------------------------------------------------------------
# Forward pass:  out = w0 * x + w1 * BatchNorm2d(x)
# ----------------------------------------------------------------------------
def batchnorm_forward(params, x, eps=1e-5, *, force_two_pass=False,
                      target_block_bytes=_TARGET_BLOCK_BYTES):
    N, C, H, W = x.shape
    if (not force_two_pass) and (N * C * H * W * 4 <= _FAST_PATH_F32_BYTES):
        # Activation fits comfortably in VMEM: 1 read + 1 write of x.
        return _fused_forward(params, x, eps)
    # General case: 2 reads + 1 write of x (minimum for batch-stat normalization).
    return _two_pass_forward(params, x, eps, target_block_bytes)


# ----------------------------------------------------------------------------
# Pure-JAX reference (mirrors the PyTorch module exactly)
# ----------------------------------------------------------------------------
def batchnorm_reference(params, x, eps=1e-5):
    mean = x.mean(axis=(0, 2, 3), keepdims=True)
    var = ((x - mean) ** 2).mean(axis=(0, 2, 3), keepdims=True)   # biased
    xn = (x - mean) * lax.rsqrt(var + eps)
    bn = xn * params['gamma'].reshape(1, -1, 1, 1) + params['beta'].reshape(1, -1, 1, 1)
    return params['w0'].reshape(()) * x + params['w1'].reshape(()) * bn


# ----------------------------------------------------------------------------
if __name__ == "__main__":
    key = jax.random.PRNGKey(0)
    kx, kg, kb, k0, k1, kx2 = jax.random.split(key, 6)

    B, C, H, W = 2, 4, 16, 16
    x = jax.random.normal(kx, (B, C, H, W), jnp.float32)

    # Module init is w0=1, w1=0, gamma=1, beta=0 (out == x); use non-trivial
    # values so the BN branch is exercised.
    params = dict(
        w0=jnp.array([1.0], jnp.float32) + 0.25 * jax.random.normal(k0, (1,), jnp.float32),
        w1=jnp.array([0.0], jnp.float32) + jax.random.normal(k1, (1,), jnp.float32),
        gamma=1.0 + 0.1 * jax.random.normal(kg, (C,), jnp.float32),
        beta=0.1 * jax.random.normal(kb, (C,), jnp.float32),
    )
    ref = batchnorm_reference(params, x)

    # 1) default dispatch: single-pass VMEM-resident fast path.
    out_fast = jax.block_until_ready(jax.jit(batchnorm_forward)(params, x))
    assert out_fast.shape == x.shape and out_fast.dtype == x.dtype
    assert bool(jnp.all(jnp.isfinite(out_fast)))
    assert bool(jnp.allclose(out_fast, ref, atol=1e-4, rtol=1e-4)), \
        float(jnp.max(jnp.abs(out_fast - ref)))

    # 2) general two-pass path with a tiny block budget so the column grid and
    #    the leading column-split (v7x) axis are genuinely exercised.
    two_pass = jax.jit(functools.partial(batchnorm_forward, force_two_pass=True,
                                         target_block_bytes=4096))
    out_tp = jax.block_until_ready(two_pass(params, x))
    assert bool(jnp.allclose(out_tp, ref, atol=1e-4, rtol=1e-4)), \
        float(jnp.max(jnp.abs(out_tp - ref)))

    # 3) ragged spatial + bf16 I/O: full-extent (pad-free) blocks, I/O kept in bf16.
    C2 = 3
    x2 = jax.random.normal(kx2, (2, C2, 10, 10), jnp.bfloat16)
    params2 = dict(
        w0=params['w0'], w1=params['w1'],
        gamma=1.0 + 0.1 * jax.random.normal(kg, (C2,), jnp.float32),
        beta=0.1 * jax.random.normal(kb, (C2,), jnp.float32),
    )
    ref2 = batchnorm_reference(params2, x2.astype(jnp.float32))
    out2a = jax.block_until_ready(jax.jit(batchnorm_forward)(params2, x2))          # fused path
    out2b = jax.block_until_ready(
        jax.jit(functools.partial(batchnorm_forward, force_two_pass=True))(params2, x2))
    assert out2a.dtype == jnp.bfloat16 and out2b.dtype == jnp.bfloat16
    assert bool(jnp.allclose(out2a.astype(jnp.float32), ref2, atol=5e-2, rtol=5e-2))
    assert bool(jnp.allclose(out2b.astype(jnp.float32), ref2, atol=5e-2, rtol=5e-2))

    print("KERNEL_OK")
</pallas_src>

<mosaic_0001>
module attributes {stable_mosaic.version = 11 : i64} {
  func.func @_fused_kernel(%arg0: memref<1x4x1xf32, #tpu.memory_space<vmem>>, %arg1: memref<1x4x1xf32, #tpu.memory_space<vmem>>, %arg2: memref<1x4x1xf32, #tpu.memory_space<vmem>>, %arg3: memref<2x4x256xf32, #tpu.memory_space<vmem>>, %arg4: memref<2x4x256xf32, #tpu.memory_space<vmem>>) attributes {dimension_semantics = [], scalar_prefetch = 0 : i64, scratch_operands = 0 : i64, tpu.core_type = #tpu.core_type<tc>} {
    %c0 = arith.constant 0 : index
    %c0_0 = arith.constant 0 : index
    %c0_1 = arith.constant 0 : index
    %0 = vector.load %arg3[%c0, %c0_0, %c0_1] : memref<2x4x256xf32, #tpu.memory_space<vmem>>, vector<2x4x256xf32>
    %cst = arith.constant dense<0.000000e+00> : vector<2x4xf32>
    %1 = vector.multi_reduction <add>, %0, %cst [2] : vector<2x4x256xf32> to vector<2x4xf32>
    %2 = vector.shape_cast %1 : vector<2x4xf32> to vector<2x4x1xf32>
    %cst_2 = arith.constant dense<0.000000e+00> : vector<4x1xf32>
    %3 = vector.multi_reduction <add>, %2, %cst_2 [0] : vector<2x4x1xf32> to vector<4x1xf32>
    %4 = vector.shape_cast %3 : vector<4x1xf32> to vector<1x4x1xf32>
    %cst_3 = arith.constant 0.001953125 : f32
    %5 = vector.broadcast %cst_3 : f32 to vector<1x4x1xf32>
    %6 = arith.mulf %4, %5 : vector<1x4x1xf32>
    %7 = vector.broadcast %6 : vector<1x4x1xf32> to vector<2x4x256xf32>
    %8 = arith.subf %0, %7 : vector<2x4x256xf32>
    %9 = arith.mulf %8, %8 : vector<2x4x256xf32>
    %cst_4 = arith.constant dense<0.000000e+00> : vector<2x4xf32>
    %10 = vector.multi_reduction <add>, %9, %cst_4 [2] : vector<2x4x256xf32> to vector<2x4xf32>
    %11 = vector.shape_cast %10 : vector<2x4xf32> to vector<2x4x1xf32>
    %cst_5 = arith.constant dense<0.000000e+00> : vector<4x1xf32>
    %12 = vector.multi_reduction <add>, %11, %cst_5 [0] : vector<2x4x1xf32> to vector<4x1xf32>
    %13 = vector.shape_cast %12 : vector<4x1xf32> to vector<1x4x1xf32>
    %cst_6 = arith.constant 0.001953125 : f32
    %14 = vector.broadcast %cst_6 : f32 to vector<1x4x1xf32>
    %15 = arith.mulf %13, %14 : vector<1x4x1xf32>
    %c0_7 = arith.constant 0 : index
    %c0_8 = arith.constant 0 : index
    %c0_9 = arith.constant 0 : index
    %16 = vector.load %arg1[%c0_7, %c0_8, %c0_9] : memref<1x4x1xf32, #tpu.memory_space<vmem>>, vector<1x4x1xf32>
    %cst_10 = arith.constant 9.99999974E-6 : f32
    %17 = vector.broadcast %cst_10 : f32 to vector<1x4x1xf32>
    %18 = arith.addf %15, %17 : vector<1x4x1xf32>
    %19 = math.rsqrt %18 : vector<1x4x1xf32>
    %20 = arith.mulf %16, %19 : vector<1x4x1xf32>
    %c0_11 = arith.constant 0 : index
    %c0_12 = arith.constant 0 : index
    %c0_13 = arith.constant 0 : index
    %21 = vector.load %arg0[%c0_11, %c0_12, %c0_13] : memref<1x4x1xf32, #tpu.memory_space<vmem>>, vector<1x4x1xf32>
    %22 = vector.broadcast %21 : vector<1x4x1xf32> to vector<2x4x256xf32>
    %23 = arith.mulf %0, %22 : vector<2x4x256xf32>
    %24 = vector.broadcast %20 : vector<1x4x1xf32> to vector<2x4x256xf32>
    %25 = arith.mulf %8, %24 : vector<2x4x256xf32>
    %26 = arith.addf %23, %25 : vector<2x4x256xf32>
    %c0_14 = arith.constant 0 : index
    %c0_15 = arith.constant 0 : index
    %c0_16 = arith.constant 0 : index
    %27 = vector.load %arg2[%c0_14, %c0_15, %c0_16] : memref<1x4x1xf32, #tpu.memory_space<vmem>>, vector<1x4x1xf32>
    %28 = vector.broadcast %27 : vector<1x4x1xf32> to vector<2x4x256xf32>
    %29 = arith.addf %26, %28 : vector<2x4x256xf32>
    %c0_17 = arith.constant 0 : index
    %c0_18 = arith.constant 0 : index
    %c0_19 = arith.constant 0 : index
    %30 = vector.load %arg4[%c0_17, %c0_18, %c0_19] : memref<2x4x256xf32, #tpu.memory_space<vmem>>, vector<2x4x256xf32>
    tpu.vector_store %arg4[%c0_17, %c0_18, %c0_19], %29 {strides = array<i32>} : memref<2x4x256xf32, #tpu.memory_space<vmem>>, vector<2x4x256xf32>,
    return
  }
}

</mosaic_0001>

<llo_original>
// kernel: batchnorm_forward.1
$region0: #{batchnorm_forward.1}
  #allocation0 [shape = 'u32[]', space=smem, size = 0x4, offset = 0x4, fixed_abs, tag = 'smem constant byte address 0x4 - core index']
  #allocation1 [shape = 'u32[144,128]{1,0:T(1,128)}', space=vmem, size = 0x12000, scoped, tag = 'internal scratch']
  %s0 = inlined_call_operand.vmem [shape: f32[1,4,1], index: 0, kind: input, shape index: {}]
  %s1 = inlined_call_operand.vmem [shape: f32[1,4,1], index: 1, kind: input, shape index: {}]
  %s2 = inlined_call_operand.vmem [shape: f32[1,4,1], index: 2, kind: input, shape index: {}]
  %s3 = inlined_call_operand.vmem [shape: f32[2,4,256], index: 3, kind: input, shape index: {}]
  %s4 = inlined_call_operand.vmem [shape: f32[2,4,256], index: 4, kind: output, shape index: {}]
  %s5 = sld [smem:[#allocation0]]
  $region26: #{batchnorm_forward.1} parent=0
    _
  %s7 = ssub.s32 1, %s5
  %s8 = scalar_select 0, %s7, %s5
  // Predicated region
  $region2: #{batchnorm_forward.1} parent=0 // pred_check
    _
  $region3: #{batchnorm_forward.1} parent=0 // pred_check_branch
    %10 = sbr.rel (0) target = $region5
  $region4: #{batchnorm_forward.1} parent=0 // pred_region
    _
  $region5: #{batchnorm_forward.1} parent=0 // pred_fallthru
    _
  // Predicated region
  $region6: #{batchnorm_forward.1} parent=0 // pred_check
    _
  $region7: #{batchnorm_forward.1} parent=0 // pred_check_branch
    %12 = sbr.rel (0) target = $region9
  $region8: #{batchnorm_forward.1} parent=0 // pred_region
    _
  $region9: #{batchnorm_forward.1} parent=0 // pred_fallthru
    _
  // Predicated region
  $region10: #{batchnorm_forward.1} parent=0 // pred_check
    _
  $region11: #{batchnorm_forward.1} parent=0 // pred_check_branch
    %14 = sbr.rel (0) target = $region13
  $region12: #{batchnorm_forward.1} parent=0 // pred_region
    _
  $region13: #{batchnorm_forward.1} parent=0 // pred_fallthru
    _
  // Predicated region
  $region14: #{batchnorm_forward.1} parent=0 // pred_check
    _
  $region15: #{batchnorm_forward.1} parent=0 // pred_check_branch
    %16 = sbr.rel (0) target = $region17
  $region16: #{batchnorm_forward.1} parent=0 // pred_region
    _
  $region17: #{batchnorm_forward.1} parent=0 // pred_fallthru
    _
  %v17 = vld [vmem:[%s3] sm:$0xff]
  %v18 = vld [vmem:[%s3 + $0x8] sm:$0xff]
  %v21 = vcombine.high %v17, %v17
  %v22 = vcombine.high %v18, %v18
  %vm25 = vcmask 1043456
  %v26 = vsel %vm25, %v17, 0.0
  %v27 = vsel %vm25, %v21, 0.0
  %v28 = vadd.f32 %v26, %v27
  %29 = vadd.xlane.f32.xlu0 %v28
  %v30 = vpop.xlane.xlu0 %29
  %v31 = vsel %vm25, %v18, 0.0
  %v32 = vsel %vm25, %v22, 0.0
  %v33 = vadd.f32 %v31, %v32
  %34 = vadd.xlane.f32.xlu0 %v33
  %v35 = vpop.xlane.xlu0 %34
  %v36 = vsel %vm25, %v30, 0.0
  %v37 = vsel %vm25, %v35, 0.0
  %v38 = vadd.f32 %v36, %v37
  %v39 = vmul.f32 %v38, 0.001953125
  %v42 = vunpack.c.l.s4 839922192
  %v43 = vunpack.c.0.s8 %v42
  %v44 = vlaneseq
  %v45 = vshrl.u32 %v44, 7
  %v46 = vsub.s32 %v43, %v45
  %v47 = vrot.slane %v39, %v46
  %v49 = vsub.f32 %v17, %v47
  %v50 = vsub.f32 %v18, %v47
  %v51 = vmul.f32 %v49, %v49
  %v52 = vmul.f32 %v50, %v50
  %v55 = vcombine.high %v51, %v51
  %v56 = vcombine.high %v52, %v52
  %v59 = vsel %vm25, %v51, 0.0
  %v60 = vsel %vm25, %v55, 0.0
  %v61 = vadd.f32 %v59, %v60
  %62 = vadd.xlane.f32.xlu0 %v61
  %v63 = vpop.xlane.xlu0 %62
  %v64 = vsel %vm25, %v52, 0.0
  %v65 = vsel %vm25, %v56, 0.0
  %v66 = vadd.f32 %v64, %v65
  %67 = vadd.xlane.f32.xlu0 %v66
  %v68 = vpop.xlane.xlu0 %67
  %v69 = vsel %vm25, %v63, 0.0
  %v70 = vsel %vm25, %v68, 0.0
  %v71 = vadd.f32 %v69, %v70
  %v72 = vmul.f32 %v71, 0.001953125
  %v73 = vld [vmem:[%s1] sm:$0xf]
  %v74 = vadd.f32 %v72, 1e-05
  %v75 = vrsqrt.pop %v74
  %v76 = vmul.f32 %v73, %v75
  %v77 = vld [vmem:[%s0] sm:$0xf]
  %79 = vset.pattern.permute.xlu0 0
  %80 = vperm.xlu0 %79, %v77
  %v81 = vpop.permute.xlu0 %80
  %v83 = vunpack.c.l.s4 839922192
  %v84 = vunpack.c.0.s8 %v83
  %v85 = vlaneseq
  %v86 = vshrl.u32 %v85, 7
  %v87 = vsub.s32 %v84, %v86
  %v88 = vrot.slane %v81, %v87
  %v90 = vmul.f32 %v17, %v88
  %v91 = vmul.f32 %v18, %v88
  %93 = vset.pattern.permute.xlu0 0
  %94 = vperm.xlu0 %93, %v76
  %v95 = vpop.permute.xlu0 %94
  %v97 = vunpack.c.l.s4 839922192
  %v98 = vunpack.c.0.s8 %v97
  %v99 = vlaneseq
  %v100 = vshrl.u32 %v99, 7
  %v101 = vsub.s32 %v98, %v100
  %v102 = vrot.slane %v95, %v101
  %v104 = vmul.f32 %v49, %v102
  %v105 = vmul.f32 %v50, %v102
  %v106 = vadd.f32 %v90, %v104
  %v107 = vadd.f32 %v91, %v105
  %v108 = vld [vmem:[%s2] sm:$0xf]
  %110 = vset.pattern.permute.xlu0 0
  %111 = vperm.xlu0 %110, %v108
  %v112 = vpop.permute.xlu0 %111
  %v114 = vunpack.c.l.s4 839922192
  %v115 = vunpack.c.0.s8 %v114
  %v116 = vlaneseq
  %v117 = vshrl.u32 %v116, 7
  %v118 = vsub.s32 %v115, %v117
  %v119 = vrot.slane %v112, %v118
  %v121 = vadd.f32 %v106, %v119
  %v122 = vadd.f32 %v107, %v119
  %123 = vst [vmem:[%s4] sm:$0xff] %v121
  %124 = vst [vmem:[%s4 + $0x8] sm:$0xff] %v122
  // Predicated region
  $region18: #{batchnorm_forward.1} parent=0 // pred_check
    _
  $region19: #{batchnorm_forward.1} parent=0 // pred_check_branch
    %126 = sbr.rel (0) target = $region21
  $region20: #{batchnorm_forward.1} parent=0 // pred_region
    _
  $region21: #{batchnorm_forward.1} parent=0 // pred_fallthru
    _
  // Predicated region
  $region22: #{batchnorm_forward.1} parent=0 // pred_check
    _
  $region23: #{batchnorm_forward.1} parent=0 // pred_check_branch
    %128 = sbr.rel (0) target = $region25
  $region24: #{batchnorm_forward.1} parent=0 // pred_region
    _
  $region25: #{batchnorm_forward.1} parent=0 // pred_fallthru
    _

</llo_original>
